<compile_context>
chip_gen: v5e
topology: v5e:2x2
jax: 0.10.0
libtpu: 0.0.40
codegen_flags: <defaults>
</compile_context>

<pallas_src>
import jax
import jax.numpy as jnp
from jax.experimental import pallas as pl
from jax.experimental.pallas import tpu as pltpu

DROPOUT_P = 0.7
INV_KEEP = 1.0 / (1.0 - DROPOUT_P)


def _round_up(x, m):
    return ((x + m - 1) // m) * m


def _mlp_eval_kernel(x_ref, w1_ref, b1_ref, w2_ref, b2_ref, h_ref, y_ref):
    wdt = w1_ref.dtype
    h = jnp.dot(x_ref[...].astype(wdt), w1_ref[...],
                preferred_element_type=jnp.float32) + b1_ref[...]
    h = jnp.maximum(h, 0.0)
    h_ref[...] = h.astype(h_ref.dtype)
    y = jnp.dot(h.astype(w2_ref.dtype), w2_ref[...],
                preferred_element_type=jnp.float32) + b2_ref[...]
    y_ref[...] = y.astype(y_ref.dtype)


def _mlp_train_kernel(x_ref, m_ref, w1_ref, b1_ref, w2_ref, b2_ref, h_ref, y_ref):
    wdt = w1_ref.dtype
    h = jnp.dot(x_ref[...].astype(wdt), w1_ref[...],
                preferred_element_type=jnp.float32) + b1_ref[...]
    h = jnp.maximum(h, 0.0)
    # Inverted dropout: keep-prob (1 - p), survivors scaled by 1/(1 - p).
    # m_ref is an int8 {0,1} keep mask; select + scale stay in f32 on the VPU.
    h = jnp.where(m_ref[...] != 0, h * INV_KEEP, 0.0)
    h_ref[...] = h.astype(h_ref.dtype)
    # y is computed from the same value stored to h_ref (f32), downcast only
    # for the MXU operands, so y tracks h_stored @ W2 + b2 up to bf16 rounding.
    y = jnp.dot(h.astype(w2_ref.dtype), w2_ref[...],
                preferred_element_type=jnp.float32) + b2_ref[...]
    y_ref[...] = y.astype(y_ref.dtype)


def model_forward(x, params, *, is_training=True, rng_key=None, compute_dtype=None):
    """x: [M, F] float32. Returns (h [M, F], logits [M, C])."""
    w1, b1, w2, b2 = params
    M, F = x.shape
    C = w2.shape[1]

    # --- compute dtype: bf16 MXU operands (f32 accumulate) once the matmuls
    # are large enough to matter; exact f32 at toy feature sizes. ---
    if compute_dtype is None:
        compute_dtype = jnp.bfloat16 if F >= 256 else x.dtype
    w1c = w1.astype(compute_dtype)
    w2c = w2.astype(compute_dtype)

    # --- lane-dense logits: pad classifier to a multiple of 128 so y stores
    # are unmasked; the real C columns are sliced back out after the call. ---
    Cp = _round_up(C, 128)
    if Cp != C:
        w2c = jnp.pad(w2c, ((0, 0), (0, Cp - C)))
        b2p = jnp.pad(b2, (0, Cp - C))
    else:
        b2p = b2
    b1_2d = b1.reshape(1, F).astype(jnp.float32)
    b2_2d = b2p.reshape(1, Cp).astype(jnp.float32)

    # --- batch tiling: large tiles amortize the ~0.35us per-step pipeline
    # overhead; keep >=2 grid steps for M > 128 so the "parallel" axis can
    # shard across both TensorCores on v7x. ---
    if M <= 128:
        tm = M
    else:
        tm = min(1024, _round_up(pl.cdiv(M, 2), 8))
    grid = (pl.cdiv(M, tm),)

    # Weights/biases: constant block index -> fetched once, resident across the
    # grid.  For large F, double-buffering the never-changing blocks is pure
    # VMEM waste (v7x has only 64 MiB), so request a single buffer there.
    if F >= 1024:
        wb_kwargs = dict(pipeline_mode=pl.Buffered(1))
    else:
        wb_kwargs = {}
    w1_spec = pl.BlockSpec((F, F), lambda i: (0, 0), **wb_kwargs)
    b1_spec = pl.BlockSpec((1, F), lambda i: (0, 0), **wb_kwargs)
    w2_spec = pl.BlockSpec((F, Cp), lambda i: (0, 0), **wb_kwargs)
    b2_spec = pl.BlockSpec((1, Cp), lambda i: (0, 0), **wb_kwargs)

    x_spec = pl.BlockSpec((tm, F), lambda i: (i, 0))
    m_spec = pl.BlockSpec((tm, F), lambda i: (i, 0))
    h_spec = pl.BlockSpec((tm, F), lambda i: (i, 0))
    y_spec = pl.BlockSpec((tm, Cp), lambda i: (i, 0))

    out_shape = (
        jax.ShapeDtypeStruct((M, F), x.dtype),
        jax.ShapeDtypeStruct((M, Cp), x.dtype),
    )

    # --- explicit VMEM budget from a footprint estimate ---
    itemsize_x = jnp.dtype(x.dtype).itemsize
    itemsize_w = jnp.dtype(compute_dtype).itemsize
    n_w_buf = 1 if F >= 1024 else 2
    est_bytes = (
        2 * tm * F * (itemsize_x + 4)               # x in + h out, double-buffered
        + 2 * tm * Cp * 4                           # y out, double-buffered
        + (2 * tm * F if is_training else 0)        # int8 dropout mask
        + n_w_buf * (F * F + F * Cp) * itemsize_w   # resident weights
        + 2 * (F + Cp) * 4                          # biases
    )
    vmem_limit = int(min(max(32 * 1024 * 1024, 2 * est_bytes), 100 * 1024 * 1024))

    cparams = pltpu.CompilerParams(
        dimension_semantics=("parallel",),
        vmem_limit_bytes=vmem_limit,
    )

    mask_bytes = M * F if is_training else 0   # int8 mask stream
    cost = pl.CostEstimate(
        flops=2 * M * F * F + 2 * M * F * Cp,
        transcendentals=0,
        bytes_accessed=(M * F * itemsize_x + mask_bytes
                        + (F * F + F * Cp) * itemsize_w + (F + Cp) * 4
                        + M * F * 4 + M * Cp * 4),
    )

    if not is_training:
        h, y_pad = pl.pallas_call(
            _mlp_eval_kernel,
            grid=grid,
            in_specs=[x_spec, w1_spec, b1_spec, w2_spec, b2_spec],
            out_specs=[h_spec, y_spec],
            out_shape=out_shape,
            compiler_params=cparams,
            cost_estimate=cost,
        )(x, w1c, b1_2d, w2c, b2_2d)
        return h, y_pad[:, :C]

    # Training: int8 inverted-dropout keep mask built in the wrapper.
    # TODO(synk): RNG stream differs from torch's dropout RNG; the Bernoulli
    # keep-probability / scaling semantics are identical.
    if rng_key is None:
        rng_key = jax.random.PRNGKey(0)
    keep = jax.random.bernoulli(rng_key, 1.0 - DROPOUT_P, (M, F)).astype(jnp.int8)

    h, y_pad = pl.pallas_call(
        _mlp_train_kernel,
        grid=grid,
        in_specs=[x_spec, m_spec, w1_spec, b1_spec, w2_spec, b2_spec],
        out_specs=[h_spec, y_spec],
        out_shape=out_shape,
        compiler_params=cparams,
        cost_estimate=cost,
    )(x, keep, w1c, b1_2d, w2c, b2_2d)
    return h, y_pad[:, :C]


def init_params(key, n_feature, n_class):
    """Xavier-uniform weights, zero biases (matches weights_init)."""
    k1, k2 = jax.random.split(key)

    def xavier(k, fan_in, fan_out):
        bound = jnp.sqrt(6.0 / (fan_in + fan_out))
        return jax.random.uniform(k, (fan_in, fan_out), jnp.float32, -bound, bound)

    w1 = xavier(k1, n_feature, n_feature)
    b1 = jnp.zeros((n_feature,), jnp.float32)
    w2 = xavier(k2, n_feature, n_class)
    b2 = jnp.zeros((n_class,), jnp.float32)
    return (w1, b1, w2, b2)


def _reference_eval(x, params):
    w1, b1, w2, b2 = params
    h = jnp.maximum(x @ w1 + b1, 0.0)
    return h, h @ w2 + b2


if __name__ == "__main__":
    # ---------- Test 1: toy shapes -> exact f32 path ----------
    kx, kp, kd = jax.random.split(jax.random.PRNGKey(0), 3)
    n_feature, n_class, batch = 32, 4, 8
    x = jax.random.normal(kx, (batch, n_feature), jnp.float32)
    params = init_params(kp, n_feature, n_class)
    w1, b1, w2, b2 = params

    h_eval, y_eval = model_forward(x, params, is_training=False)
    h_ref, y_ref = _reference_eval(x, params)
    assert h_eval.shape == (batch, n_feature) and y_eval.shape == (batch, n_class)
    assert jnp.allclose(h_eval, h_ref, atol=1e-5), "hidden mismatch (f32)"
    assert jnp.allclose(y_eval, y_ref, atol=1e-5), "logits mismatch (f32)"

    h_tr, y_tr = model_forward(x, params, is_training=True, rng_key=kd)
    assert h_tr.shape == (batch, n_feature) and y_tr.shape == (batch, n_class)
    scaled = h_ref / (1.0 - DROPOUT_P)
    ok = jnp.isclose(h_tr, 0.0, atol=1e-6) | jnp.isclose(h_tr, scaled, atol=1e-4)
    assert bool(jnp.all(ok)), "dropout semantics mismatch (f32)"
    assert jnp.allclose(y_tr, h_tr @ w2 + b2, atol=1e-4), "train logits mismatch (f32)"

    # ---------- Test 2: larger F -> bf16 MXU path, multi-tile batch grid ----------
    kx2, kp2, kd2 = jax.random.split(jax.random.PRNGKey(1), 3)
    n_feature2, n_class2, batch2 = 256, 10, 512
    x2 = jax.random.normal(kx2, (batch2, n_feature2), jnp.float32)
    params2 = init_params(kp2, n_feature2, n_class2)
    w1b, b1b, w2b, b2b = params2

    h2_eval, y2_eval = model_forward(x2, params2, is_training=False)
    h2_ref, y2_ref = _reference_eval(x2, params2)
    assert h2_eval.shape == (batch2, n_feature2) and y2_eval.shape == (batch2, n_class2)
    assert jnp.allclose(h2_eval, h2_ref, atol=5e-2, rtol=5e-2), "hidden mismatch (bf16)"
    assert jnp.allclose(y2_eval, y2_ref, atol=5e-2, rtol=5e-2), "logits mismatch (bf16)"

    h2_tr, y2_tr = model_forward(x2, params2, is_training=True, rng_key=kd2)
    scaled2 = h2_ref / (1.0 - DROPOUT_P)
    ok2 = (jnp.isclose(h2_tr, 0.0, atol=1e-6)
           | jnp.isclose(h2_tr, scaled2, atol=5e-2, rtol=5e-2))
    assert bool(jnp.all(ok2)), "dropout semantics mismatch (bf16)"
    assert jnp.allclose(y2_tr, h2_tr @ w2b + b2b, atol=1e-1, rtol=5e-2), \
        "train logits mismatch (bf16)"

    jax.block_until_ready((h_eval, y_eval, h_tr, y_tr,
                           h2_eval, y2_eval, h2_tr, y2_tr))
    print("KERNEL_OK")
</pallas_src>

<mosaic_0001>
module attributes {stable_mosaic.version = 11 : i64} {
  func.func @_mlp_eval_kernel(%arg0: i32, %arg1: memref<8x32xf32, #tpu.memory_space<vmem>>, %arg2: memref<32x32xf32, #tpu.memory_space<vmem>>, %arg3: memref<1x32xf32, #tpu.memory_space<vmem>>, %arg4: memref<32x128xf32, #tpu.memory_space<vmem>>, %arg5: memref<1x128xf32, #tpu.memory_space<vmem>>, %arg6: memref<8x32xf32, #tpu.memory_space<vmem>>, %arg7: memref<8x128xf32, #tpu.memory_space<vmem>>) attributes {dimension_semantics = [#tpu.dimension_semantics<parallel>], iteration_bounds = array<i64: 1>, scalar_prefetch = 0 : i64, scratch_operands = 0 : i64, tpu.core_type = #tpu.core_type<tc>, window_params = [{transform_indices = @transform_0, window_bounds = array<i64: 8, 32>}, {pipeline_mode = #tpu.pipeline_mode<synchronous>, transform_indices = @transform_1, window_bounds = array<i64: 32, 32>}, {pipeline_mode = #tpu.pipeline_mode<synchronous>, transform_indices = @transform_2, window_bounds = array<i64: 1, 32>}, {pipeline_mode = #tpu.pipeline_mode<synchronous>, transform_indices = @transform_3, window_bounds = array<i64: 32, 128>}, {pipeline_mode = #tpu.pipeline_mode<synchronous>, transform_indices = @transform_4, window_bounds = array<i64: 1, 128>}, {transform_indices = @transform_5, window_bounds = array<i64: 8, 32>}, {transform_indices = @transform_6, window_bounds = array<i64: 8, 128>}]} {
    %c0 = arith.constant 0 : index
    %c0_0 = arith.constant 0 : index
    %0 = vector.load %arg1[%c0, %c0_0] : memref<8x32xf32, #tpu.memory_space<vmem>>, vector<8x32xf32>
    %c0_1 = arith.constant 0 : index
    %c0_2 = arith.constant 0 : index
    %1 = vector.load %arg2[%c0_1, %c0_2] : memref<32x32xf32, #tpu.memory_space<vmem>>, vector<32x32xf32>
    %cst = arith.constant dense<0.000000e+00> : vector<8x32xf32>
    %2 = tpu.matmul %0, %1, %cst {dimension_numbers = #tpu.dot_dimension_numbers<[1], [0], [0], [1], [0, 0, 1, 1], [], []>} : vector<8x32xf32>, vector<32x32xf32>, vector<8x32xf32> -> vector<8x32xf32>
    %c0_3 = arith.constant 0 : index
    %c0_4 = arith.constant 0 : index
    %3 = vector.load %arg3[%c0_3, %c0_4] : memref<1x32xf32, #tpu.memory_space<vmem>>, vector<1x32xf32>
    %4 = vector.broadcast %3 : vector<1x32xf32> to vector<8x32xf32>
    %5 = arith.addf %2, %4 : vector<8x32xf32>
    %cst_5 = arith.constant 0.000000e+00 : f32
    %6 = vector.broadcast %cst_5 : f32 to vector<8x32xf32>
    %7 = arith.maximumf %5, %6 : vector<8x32xf32>
    %c0_6 = arith.constant 0 : index
    %c0_7 = arith.constant 0 : index
    %8 = vector.load %arg6[%c0_6, %c0_7] : memref<8x32xf32, #tpu.memory_space<vmem>>, vector<8x32xf32>
    tpu.vector_store %arg6[%c0_6, %c0_7], %7 {strides = array<i32>} : memref<8x32xf32, #tpu.memory_space<vmem>>, vector<8x32xf32>,
    %c0_8 = arith.constant 0 : index
    %c0_9 = arith.constant 0 : index
    %9 = vector.load %arg4[%c0_8, %c0_9] : memref<32x128xf32, #tpu.memory_space<vmem>>, vector<32x128xf32>
    %cst_10 = arith.constant dense<0.000000e+00> : vector<8x128xf32>
    %10 = tpu.matmul %7, %9, %cst_10 {dimension_numbers = #tpu.dot_dimension_numbers<[1], [0], [0], [1], [0, 0, 1, 1], [], []>} : vector<8x32xf32>, vector<32x128xf32>, vector<8x128xf32> -> vector<8x128xf32>
    %c0_11 = arith.constant 0 : index
    %c0_12 = arith.constant 0 : index
    %11 = vector.load %arg5[%c0_11, %c0_12] : memref<1x128xf32, #tpu.memory_space<vmem>>, vector<1x128xf32>
    %12 = vector.broadcast %11 : vector<1x128xf32> to vector<8x128xf32>
    %13 = arith.addf %10, %12 : vector<8x128xf32>
    %c0_13 = arith.constant 0 : index
    %c0_14 = arith.constant 0 : index
    %14 = vector.load %arg7[%c0_13, %c0_14] : memref<8x128xf32, #tpu.memory_space<vmem>>, vector<8x128xf32>
    tpu.vector_store %arg7[%c0_13, %c0_14], %13 {strides = array<i32>} : memref<8x128xf32, #tpu.memory_space<vmem>>, vector<8x128xf32>,
    return
  }
  func.func @transform_0(%arg0: i32) -> (i32, i32) {
    %c0_i32 = arith.constant 0 : i32
    %c0_i32_0 = arith.constant 0 : i32
    return %arg0, %c0_i32 : i32, i32
  }
  func.func @transform_1(%arg0: i32) -> (i32, i32) {
    %c0_i32 = arith.constant 0 : i32
    %c0_i32_0 = arith.constant 0 : i32
    %c0_i32_1 = arith.constant 0 : i32
    return %c0_i32, %c0_i32_0 : i32, i32
  }
  func.func @transform_2(%arg0: i32) -> (i32, i32) {
    %c0_i32 = arith.constant 0 : i32
    %c0_i32_0 = arith.constant 0 : i32
    %c0_i32_1 = arith.constant 0 : i32
    return %c0_i32, %c0_i32_0 : i32, i32
  }
  func.func @transform_3(%arg0: i32) -> (i32, i32) {
    %c0_i32 = arith.constant 0 : i32
    %c0_i32_0 = arith.constant 0 : i32
    %c0_i32_1 = arith.constant 0 : i32
    return %c0_i32, %c0_i32_0 : i32, i32
  }
  func.func @transform_4(%arg0: i32) -> (i32, i32) {
    %c0_i32 = arith.constant 0 : i32
    %c0_i32_0 = arith.constant 0 : i32
    %c0_i32_1 = arith.constant 0 : i32
    return %c0_i32, %c0_i32_0 : i32, i32
  }
  func.func @transform_5(%arg0: i32) -> (i32, i32) {
    %c0_i32 = arith.constant 0 : i32
    %c0_i32_0 = arith.constant 0 : i32
    return %arg0, %c0_i32 : i32, i32
  }
  func.func @transform_6(%arg0: i32) -> (i32, i32) {
    %c0_i32 = arith.constant 0 : i32
    %c0_i32_0 = arith.constant 0 : i32
    return %arg0, %c0_i32 : i32, i32
  }
}

</mosaic_0001>

<llo_original>
// kernel: tpu_custom_call.1
$region0: #{tpu_custom_call.1}
  #allocation0 [shape = 'u32[]', space=smem, size = 0x4, offset = 0x4, fixed_abs, tag = 'smem constant byte address 0x4 - core index']
  #allocation1 [shape = 'u32[72,128]{1,0:T(1,128)}', space=vmem, size = 0x9000, scoped, tag = 'internal scratch']
  %s0 = inlined_call_operand.hbm [shape: f32[8,32], index: 0, kind: input, shape index: {}]
  %s1 = inlined_call_operand.hbm [shape: f32[32,32], index: 1, kind: input, shape index: {}]
  %s2 = inlined_call_operand.vmem [shape: f32[1,32], index: 2, kind: input, shape index: {}]
  %s3 = inlined_call_operand.hbm [shape: f32[32,128], index: 3, kind: input, shape index: {}]
  %s4 = inlined_call_operand.vmem [shape: f32[1,128], index: 4, kind: input, shape index: {}]
  %s5 = inlined_call_operand.hbm [shape: f32[8,32], index: 5, kind: output, shape index: {0}]
  %s6 = inlined_call_operand.hbm [shape: f32[8,128], index: 6, kind: output, shape index: {1}]
  %7 = xla_tuple %s5, %s6
  %s8 = sld [smem:[#allocation0]]
  $region50: #{tpu_custom_call.1} parent=0
    _
  %s10 = ssub.s32 1, %s8
  %s11 = scalar_select 0, %s10, %s8
  $region1: #{tpu_custom_call.1} parent=0
    #allocation2 [shape = 'u8[4096]{0}', space=vmem, size = 0x1000, scoped, tag = 'input window, operand 0, single buffered']
    #allocation3 [shape = 's32[1]{0}', space=sflag, size = 0x4, scoped, tag = 'scoped memory for tpu_custom_call.1']
    #allocation4 [shape = 's32[1]{0}', space=sflag, size = 0x4, scoped, tag = 'scoped memory for tpu_custom_call.1']
    #allocation5 [shape = 'u8[16384]{0}', space=vmem, size = 0x4000, scoped, tag = 'input window, operand 1, single buffered']
    #allocation6 [shape = 's32[1]{0}', space=sflag, size = 0x4, scoped, tag = 'scoped memory for tpu_custom_call.1']
    #allocation7 [shape = 'u8[16384]{0}', space=vmem, size = 0x4000, scoped, tag = 'input window, operand 3, single buffered']
    #allocation8 [shape = 'u8[4096]{0}', space=vmem, size = 0x1000, scoped, tag = 'output window, operand 0, single buffered']
    #allocation9 [shape = 'u8[4096]{0}', space=vmem, size = 0x1000, scoped, tag = 'output window, operand 1, single buffered']
    #allocation10 [shape = 's32[1]{0}', space=sflag, size = 0x4, scoped, tag = 'scoped memory for tpu_custom_call.1']
    %12 = vsyncpa [#allocation3], 0
    %13 = vsyncpa [#allocation6], 0
    %14 = vsyncpa [#allocation4], 0
    %15 = vsyncpa [#allocation10], 0
    // Predicated region
    $region2: #{tpu_custom_call.1} parent=1 // pred_check
      _
    $region3: #{tpu_custom_call.1} parent=1 // pred_check_branch
      %17 = sbr.rel (0) target = $region5
    $region4: #{tpu_custom_call.1} parent=1 // pred_region
      %19 = vsyncadd [#allocation3], 0
      %s21 = sshll.u32 %s0, 4
      %s22 = int_to_ptr.hbm [resolvable:$true] %s21
      %s23 = sshll.u32 [#allocation2], 4
      %s24 = int_to_ptr.vmem [resolvable:$true] %s23
      %26 = dma.hbm_to_vmem [thread:$0]  %s22, 128, %s24, [#allocation3]
    $region5: #{tpu_custom_call.1} parent=1 // pred_fallthru
      _
    // Predicated region
    $region6: #{tpu_custom_call.1} parent=1 // pred_check
      _
    $region7: #{tpu_custom_call.1} parent=1 // pred_check_branch
      %28 = sbr.rel (0) target = $region9
    $region8: #{tpu_custom_call.1} parent=1 // pred_region
      %30 = vsyncadd [#allocation6], 0
      %s31 = sshll.u32 %s1, 4
      %s32 = int_to_ptr.hbm [resolvable:$true] %s31
      %s33 = sshll.u32 [#allocation5], 4
      %s34 = int_to_ptr.vmem [resolvable:$true] %s33
      %39 = dma.hbm_to_vmem [thread:$0]  %s32, 512, %s34, [#allocation6], 128, 128, 8
    $region9: #{tpu_custom_call.1} parent=1 // pred_fallthru
      _
    // Predicated region
    $region10: #{tpu_custom_call.1} parent=1 // pred_check
      _
    $region11: #{tpu_custom_call.1} parent=1 // pred_check_branch
      %41 = sbr.rel (0) target = $region13
    $region12: #{tpu_custom_call.1} parent=1 // pred_region
      _
    $region13: #{tpu_custom_call.1} parent=1 // pred_fallthru
      _
    // Predicated region
    $region14: #{tpu_custom_call.1} parent=1 // pred_check
      _
    $region15: #{tpu_custom_call.1} parent=1 // pred_check_branch
      %43 = sbr.rel (0) target = $region17
    $region16: #{tpu_custom_call.1} parent=1 // pred_region
      %45 = vsyncadd [#allocation6], 0
      %s46 = sshll.u32 %s3, 4
      %s47 = int_to_ptr.hbm [resolvable:$true] %s46
      %s48 = sshll.u32 [#allocation7], 4
      %s49 = int_to_ptr.vmem [resolvable:$true] %s48
      %54 = dma.hbm_to_vmem [thread:$0]  %s47, 512, %s49, [#allocation6], 128, 128, 8
    $region17: #{tpu_custom_call.1} parent=1 // pred_fallthru
      _
    // Predicated region
    $region18: #{tpu_custom_call.1} parent=1 // pred_check
      _
    $region19: #{tpu_custom_call.1} parent=1 // pred_check_branch
      %56 = sbr.rel (0) target = $region21
    $region20: #{tpu_custom_call.1} parent=1 // pred_region
      _
    $region21: #{tpu_custom_call.1} parent=1 // pred_fallthru
      _
    // Predicated region
    $region22: #{tpu_custom_call.1} parent=1 // pred_check
      _
    $region23: #{tpu_custom_call.1} parent=1 // pred_check_branch
      %58 = sbr.rel (0) target = $region25
    $region24: #{tpu_custom_call.1} parent=1 // pred_region
      %60 = dma.done [#allocation3], 128
    $region25: #{tpu_custom_call.1} parent=1 // pred_fallthru
      _
    // Predicated region
    $region26: #{tpu_custom_call.1} parent=1 // pred_check
      _
    $region27: #{tpu_custom_call.1} parent=1 // pred_check_branch
      %62 = sbr.rel (0) target = $region29
    $region28: #{tpu_custom_call.1} parent=1 // pred_region
      %64 = dma.done [#allocation6], 512
    $region29: #{tpu_custom_call.1} parent=1 // pred_fallthru
      _
    // Predicated region
    $region30: #{tpu_custom_call.1} parent=1 // pred_check
      _
    $region31: #{tpu_custom_call.1} parent=1 // pred_check_branch
      %66 = sbr.rel (0) target = $region33
    $region32: #{tpu_custom_call.1} parent=1 // pred_region
      %68 = dma.done [#allocation6], 512
    $region33: #{tpu_custom_call.1} parent=1 // pred_fallthru
      _
    %v69 = vld [vmem:[#allocation2] sm:$0xff]
    %v70 = vld [vmem:[#allocation5] sm:$0xff]
    %v71 = vld [vmem:[#allocation5 + $0x8] sm:$0xff]
    %v72 = vld [vmem:[#allocation5 + $0x10] sm:$0xff]
    %v73 = vld [vmem:[#allocation5 + $0x18] sm:$0xff]
    %v74 = vld [vmem:[%s2] sm:$0x1]
    %v76 = vperm.slane %v74, 0
    %vm78 = vcmask 261120
    %v80 = vsel %vm78, %v69, 0
    %82 = vmatpush.msra.mxu0 0.0
    %83 = vmatpush.msra.mxu0 0.0
    %84 = vmatpush.msra.mxu0 0.0
    %85 = vmatpush.msra.mxu0 0.0
    %86 = vmatpush.msra.mxu0 0.0
    %87 = vmatpush.msra.mxu0 0.0
    %88 = vmatpush.msra.mxu0 0.0
    %89 = vmatpush.msra.mxu0 0.0
    %90 = vmatpush.msra.mxu0 0.0
    %91 = vmatpush.msra.mxu0 0.0
    %92 = vmatpush.msra.mxu0 0.0
    %93 = vmatpush.msra.mxu0 0.0
    %94 = vmatpush.msra.mxu0 %v73
    %95 = vmatpush.msra.mxu0 %v72
    %96 = vmatpush.msra.mxu0 %v71
    %97 = vmatpush.msra.mxu0 %v70
    %98 = vmatmul.f32.gmra.mxu0 %v80
    %v99 = vpop.f32.mrf.mxu0
    %v100 = vadd.f32 %v76, %v99
    %101 = vdwg.mxu0
    %v102 = vmax.f32 %v100, 0.0
    %103 = vst.msk [vmem:[#allocation8] sm:$0xff] %vm78, %v102
    %v104 = vld [vmem:[#allocation7] sm:$0xff]
    %v105 = vld [vmem:[#allocation7 + $0x8] sm:$0xff]
    %v106 = vld [vmem:[#allocation7 + $0x10] sm:$0xff]
    %v107 = vld [vmem:[#allocation7 + $0x18] sm:$0xff]
    %v108 = vld [vmem:[%s4] sm:$0x1]
    %v110 = vperm.slane %v108, 0
    %v113 = vsel %vm78, %v102, 0
    %115 = vmatpush.msra.mxu0 0.0
    %116 = vmatpush.msra.mxu0 0.0
    %117 = vmatpush.msra.mxu0 0.0
    %118 = vmatpush.msra.mxu0 0.0
    %119 = vmatpush.msra.mxu0 0.0
    %120 = vmatpush.msra.mxu0 0.0
    %121 = vmatpush.msra.mxu0 0.0
    %122 = vmatpush.msra.mxu0 0.0
    %123 = vmatpush.msra.mxu0 0.0
    %124 = vmatpush.msra.mxu0 0.0
    %125 = vmatpush.msra.mxu0 0.0
    %126 = vmatpush.msra.mxu0 0.0
    %127 = vmatpush.msra.mxu0 %v107
    %128 = vmatpush.msra.mxu0 %v106
    %129 = vmatpush.msra.mxu0 %v105
    %130 = vmatpush.msra.mxu0 %v104
    %131 = vmatmul.f32.gmra.mxu0 %v113
    %v132 = vpop.f32.mrf.mxu0
    %v133 = vadd.f32 %v110, %v132
    %134 = vdwg.mxu0
    %135 = vst [vmem:[#allocation9] sm:$0xff] %v133
    // Predicated region
    $region34: #{tpu_custom_call.1} parent=1 // pred_check
      _
    $region35: #{tpu_custom_call.1} parent=1 // pred_check_branch
      %137 = sbr.rel (0) target = $region37
    $region36: #{tpu_custom_call.1} parent=1 // pred_region
      %139 = vsyncadd [#allocation4], 0
      %s141 = sshll.u32 [#allocation8], 4
      %s142 = int_to_ptr.vmem [resolvable:$true] %s141
      %s143 = sshll.u32 %s5, 4
      %s144 = int_to_ptr.hbm [resolvable:$true] %s143
      %146 = dma.vmem_to_hbm [thread:$0]  %s142, 128, %s144, [#allocation4]
    $region37: #{tpu_custom_call.1} parent=1 // pred_fallthru
      _
    // Predicated region
    $region38: #{tpu_custom_call.1} parent=1 // pred_check
      _
    $region39: #{tpu_custom_call.1} parent=1 // pred_check_branch
      %148 = sbr.rel (0) target = $region41
    $region40: #{tpu_custom_call.1} parent=1 // pred_region
      %150 = vsyncadd [#allocation10], 0
      %s152 = sshll.u32 [#allocation9], 4
      %s153 = int_to_ptr.vmem [resolvable:$true] %s152
      %s154 = sshll.u32 %s6, 4
      %s155 = int_to_ptr.hbm [resolvable:$true] %s154
      %157 = dma.vmem_to_hbm [thread:$0]  %s153, 128, %s155, [#allocation10]
    $region41: #{tpu_custom_call.1} parent=1 // pred_fallthru
      _
    // Predicated region
    $region42: #{tpu_custom_call.1} parent=1 // pred_check
      _
    $region43: #{tpu_custom_call.1} parent=1 // pred_check_branch
      %159 = sbr.rel (0) target = $region45
    $region44: #{tpu_custom_call.1} parent=1 // pred_region
      %161 = dma.done [#allocation4], 128
    $region45: #{tpu_custom_call.1} parent=1 // pred_fallthru
      _
    // Predicated region
    $region46: #{tpu_custom_call.1} parent=1 // pred_check
      _
    $region47: #{tpu_custom_call.1} parent=1 // pred_check_branch
      %163 = sbr.rel (0) target = $region49
    $region48: #{tpu_custom_call.1} parent=1 // pred_region
      %165 = dma.done [#allocation10], 128
    $region49: #{tpu_custom_call.1} parent=1 // pred_fallthru
      _
    %166 = vsyncpa [#allocation3], 1
    %167 = vsyncpa [#allocation6], 1
    %168 = vsyncpa [#allocation4], 1
    %169 = vsyncpa [#allocation10], 1

</llo_original>
